<compile_context>
chip_gen: v6e
topology: v6e:2x2x1
jax: 0.10.0
libtpu: 0.0.40
codegen_flags: <defaults>
</compile_context>

<pallas_src>
import functools

import numpy as np
import jax
import jax.numpy as jnp
from jax.experimental import pallas as pl
from jax.experimental.pallas import tpu as pltpu

_SUBLANES = 8      # rows of the packed layout (one int32 vreg is 8 x 128)
_LANES_MIN = 128   # lane quantum


def _greedy_ctc_kernel(idx_ref, att_ref, n_ref, keep_ref, *, blank: int):
    """keep[r, j] = 1 iff the element at row-major position r*L+j survives:
    attention>0, within the true length n, starts a new run w.r.t. the
    attention-filtered sequence, and != blank.

    idx_ref/att_ref/keep_ref are (8, L) VMEM tiles (row-major packed sequence),
    n_ref is a (1,) SMEM scalar holding the true length.
    NOTE: labels are assumed >= 0 (CTC class indices); -1 is the scan sentinel.
    """
    S, L = idx_ref.shape
    v = idx_ref[...]                                     # (S, L) int32 labels
    n = n_ref[0]                                         # true sequence length
    sent = jnp.int32(-1)

    lane = jax.lax.broadcasted_iota(jnp.int32, (S, L), 1)
    sub = jax.lax.broadcasted_iota(jnp.int32, (S, L), 0)
    pos = sub * L + lane                                 # row-major element index
    valid = (att_ref[...] > 0) & (pos < n)

    # Scan state: element's own label where valid, else sentinel -1.
    cur = jnp.where(valid, v, sent)

    # Level 1: lane-wise hold-last-valid scan (log2(L) single-roll steps).
    # Wrapped lanes are forced to the sentinel, never left unmasked.
    d = 1
    while d < L:
        rolled = jnp.where(lane >= d, pltpu.roll(cur, shift=d, axis=1), sent)
        cur = jnp.where(cur >= 0, cur, rolled)
        d *= 2
    # cur[r, j] = last valid label in row r at lane <= j, else -1.

    # Level 2: carry the last valid label across sublane rows (log2(S) steps).
    rowlast = jnp.broadcast_to(cur[:, L - 1:L], (S, L))  # last valid in row r
    rc = jnp.where(sub >= 1, pltpu.roll(rowlast, shift=1, axis=0), sent)
    d = 1
    while d < S:
        rolled = jnp.where(sub >= d, pltpu.roll(rc, shift=d, axis=0), sent)
        rc = jnp.where(rc >= 0, rc, rolled)
        d *= 2
    # rc[r, :] = last valid label in any row < r, else -1.

    full = jnp.where(cur >= 0, cur, rc)                  # inclusive hold-last scan
    # prev[i] = last valid label strictly before row-major position i (-1 if
    # none).  Lane 0 of row r takes rc[r] (== full[r-1, L-1], or -1 for r=0).
    prev = jnp.where(lane >= 1, pltpu.roll(full, shift=1, axis=1), rc)

    # prev == -1 ("no prior valid label") never equals a real label (>= 0), so
    # the first element of the filtered sequence is kept iff it != blank,
    # exactly matching torch.unique_consecutive + blank drop semantics.
    keep = valid & (v != jnp.int32(blank)) & (v != prev)
    keep_ref[...] = keep.astype(jnp.int32)               # lane-dense unmasked vst


@functools.lru_cache(maxsize=None)
def _build_decoder(lanes: int, blank: int):
    kernel = functools.partial(_greedy_ctc_kernel, blank=blank)
    call = pl.pallas_call(
        kernel,
        out_shape=jax.ShapeDtypeStruct((_SUBLANES, lanes), jnp.int32),
        in_specs=[
            pl.BlockSpec(memory_space=pltpu.MemorySpace.VMEM),   # indices (8, L)
            pl.BlockSpec(memory_space=pltpu.MemorySpace.VMEM),   # attention (8, L)
            pl.BlockSpec(memory_space=pltpu.MemorySpace.SMEM),   # n (1,)
        ],
        out_specs=pl.BlockSpec(memory_space=pltpu.MemorySpace.VMEM),
    )
    return jax.jit(call)


def greedy_ctc_decode(indices, attention=None, blank=0):
    """Pallas-backed GreedyCTCDecoder.forward. Returns List[int]."""
    idx_np = np.asarray(jax.device_get(indices), dtype=np.int32).reshape(-1)
    n = int(idx_np.shape[0])
    # Lanes per sublane row: capacity 8*L >= n, L a multiple of 128.  All
    # n <= 1024 share L=128 (one compile).  Even very long utterances stay a
    # few hundred KiB of VMEM -- far under v7x's 32 MiB scoped / 64 MiB
    # physical budget -- so a single whole-sequence block is used (no grid).
    L = _LANES_MIN * max(1, -(-n // (_SUBLANES * _LANES_MIN)))

    # Cheap host-side (numpy) packing into the (8, L) row-major layout; the
    # attention>0 binarization and the pos<n padding mask happen in-kernel.
    idx_pad = np.zeros((_SUBLANES, L), np.int32)
    idx_pad.reshape(-1)[:n] = idx_np
    att_pad = np.zeros((_SUBLANES, L), np.float32)
    if attention is None:
        att_pad.reshape(-1)[:n] = 1.0
    else:
        att_pad.reshape(-1)[:n] = np.asarray(
            jax.device_get(attention), dtype=np.float32).reshape(-1)
    n_arr = np.array([n], np.int32)

    run = _build_decoder(L, int(blank))
    keep = run(idx_pad, att_pad, n_arr)

    # TODO(synk): variable-length compaction + Python list construction has no
    # dense Pallas equivalent (the module returns a Python list); device_get
    # already synchronizes, then a host-side gather from the kernel's keep mask.
    keep_np = np.asarray(jax.device_get(keep)).reshape(-1)[:n]
    return [int(x) for x in idx_np[keep_np > 0]]


def _reference(indices, attention, blank):
    idx = np.asarray(jax.device_get(indices))
    if attention is not None:
        idx = idx[np.asarray(jax.device_get(attention)) > 0]
    out, prev = [], None
    for v in idx.tolist():
        if prev is None or v != prev:      # unique_consecutive: keep run starts
            if v != blank:
                out.append(int(v))
        prev = v
    return out


if __name__ == "__main__":
    key = jax.random.PRNGKey(0)
    k1, k2, k3, k4, k5, k6 = jax.random.split(key, 6)

    # Small case (fits one sublane row).
    N = 16
    indices = jax.random.randint(k1, (N,), 0, 5, dtype=jnp.int32)   # blank = 0
    attention = (jax.random.uniform(k2, (N,)) > 0.3).astype(jnp.float32)
    out_with_att = greedy_ctc_decode(indices, attention, blank=0)
    out_no_att = greedy_ctc_decode(indices, None, blank=0)
    assert out_with_att == _reference(indices, attention, 0), (
        out_with_att, _reference(indices, attention, 0))
    assert out_no_att == _reference(indices, None, 0), (
        out_no_att, _reference(indices, None, 0))

    # Mid-size with many repeats (still one row) — exercises the lane scan.
    M = 96
    idx2 = jax.random.randint(k3, (M,), 0, 3, dtype=jnp.int32)
    att2 = (jax.random.uniform(k4, (M,)) > 0.5).astype(jnp.float32)
    assert greedy_ctc_decode(idx2, att2, blank=0) == _reference(idx2, att2, 0)
    assert greedy_ctc_decode(idx2, None, blank=0) == _reference(idx2, None, 0)

    # Long case spanning multiple sublane rows — exercises the cross-sublane
    # carry and the prev computation across row boundaries.
    P = 300
    idx3 = jax.random.randint(k5, (P,), 0, 3, dtype=jnp.int32)
    att3 = (jax.random.uniform(k6, (P,)) > 0.4).astype(jnp.float32)
    assert greedy_ctc_decode(idx3, att3, blank=0) == _reference(idx3, att3, 0)
    assert greedy_ctc_decode(idx3, None, blank=0) == _reference(idx3, None, 0)

    # Run the kernel once more and block on the raw device result.
    keep_dev = _build_decoder(128, 0)(
        np.zeros((_SUBLANES, 128), np.int32),
        np.ones((_SUBLANES, 128), np.float32),
        np.array([8], np.int32))
    jax.block_until_ready(keep_dev)

    print("KERNEL_OK")
</pallas_src>

<mosaic_0001>
module attributes {stable_mosaic.version = 11 : i64} {
  func.func @_greedy_ctc_kernel(%arg0: memref<8x128xi32, #tpu.memory_space<vmem>>, %arg1: memref<8x128xf32, #tpu.memory_space<vmem>>, %arg2: memref<1xi32, #tpu.memory_space<smem>>, %arg3: memref<8x128xi32, #tpu.memory_space<vmem>>) attributes {dimension_semantics = [], scalar_prefetch = 0 : i64, scratch_operands = 0 : i64, tpu.core_type = #tpu.core_type<tc>} {
    %c0 = arith.constant 0 : index
    %c0_0 = arith.constant 0 : index
    %0 = vector.load %arg0[%c0, %c0_0] : memref<8x128xi32, #tpu.memory_space<vmem>>, vector<8x128xi32>
    %c0_1 = arith.constant 0 : index
    %1 = memref.load %arg2[%c0_1] : memref<1xi32, #tpu.memory_space<smem>>
    %2 = tpu.iota {dimensions = array<i32: 1>} : vector<8x128xi32>
    %3 = tpu.iota {dimensions = array<i32: 0>} : vector<8x128xi32>
    %c128_i32 = arith.constant 128 : i32
    %4 = vector.broadcast %c128_i32 : i32 to vector<8x128xi32>
    %5 = arith.muli %3, %4 : vector<8x128xi32>
    %6 = arith.addi %5, %2 : vector<8x128xi32>
    %c0_2 = arith.constant 0 : index
    %c0_3 = arith.constant 0 : index
    %7 = vector.load %arg1[%c0_2, %c0_3] : memref<8x128xf32, #tpu.memory_space<vmem>>, vector<8x128xf32>
    %cst = arith.constant 0.000000e+00 : f32
    %8 = vector.broadcast %cst : f32 to vector<8x128xf32>
    %9 = arith.cmpf ogt, %7, %8 : vector<8x128xf32>
    %10 = vector.broadcast %1 : i32 to vector<8x128xi32>
    %11 = arith.cmpi slt, %6, %10 : vector<8x128xi32>
    %12 = arith.andi %9, %11 : vector<8x128xi1>
    %c-1_i32 = arith.constant -1 : i32
    %13 = vector.broadcast %c-1_i32 : i32 to vector<8x128xi32>
    %14 = arith.select %12, %0, %13 : vector<8x128xi1>, vector<8x128xi32>
    %c1_i32 = arith.constant 1 : i32
    %15 = vector.broadcast %c1_i32 : i32 to vector<8x128xi32>
    %16 = arith.cmpi sge, %2, %15 : vector<8x128xi32>
    %c1_i32_4 = arith.constant 1 : i32
    %17 = tpu.dynamic_rotate %14 by %c1_i32_4 dim 1 : vector<8x128xi32>, i32 -> vector<8x128xi32>
    %c-1_i32_5 = arith.constant -1 : i32
    %18 = vector.broadcast %c-1_i32_5 : i32 to vector<8x128xi32>
    %19 = arith.select %16, %17, %18 : vector<8x128xi1>, vector<8x128xi32>
    %c0_i32 = arith.constant 0 : i32
    %20 = vector.broadcast %c0_i32 : i32 to vector<8x128xi32>
    %21 = arith.cmpi sge, %14, %20 : vector<8x128xi32>
    %22 = arith.select %21, %14, %19 : vector<8x128xi1>, vector<8x128xi32>
    %c2_i32 = arith.constant 2 : i32
    %23 = vector.broadcast %c2_i32 : i32 to vector<8x128xi32>
    %24 = arith.cmpi sge, %2, %23 : vector<8x128xi32>
    %c2_i32_6 = arith.constant 2 : i32
    %25 = tpu.dynamic_rotate %22 by %c2_i32_6 dim 1 : vector<8x128xi32>, i32 -> vector<8x128xi32>
    %c-1_i32_7 = arith.constant -1 : i32
    %26 = vector.broadcast %c-1_i32_7 : i32 to vector<8x128xi32>
    %27 = arith.select %24, %25, %26 : vector<8x128xi1>, vector<8x128xi32>
    %c0_i32_8 = arith.constant 0 : i32
    %28 = vector.broadcast %c0_i32_8 : i32 to vector<8x128xi32>
    %29 = arith.cmpi sge, %22, %28 : vector<8x128xi32>
    %30 = arith.select %29, %22, %27 : vector<8x128xi1>, vector<8x128xi32>
    %c4_i32 = arith.constant 4 : i32
    %31 = vector.broadcast %c4_i32 : i32 to vector<8x128xi32>
    %32 = arith.cmpi sge, %2, %31 : vector<8x128xi32>
    %c4_i32_9 = arith.constant 4 : i32
    %33 = tpu.dynamic_rotate %30 by %c4_i32_9 dim 1 : vector<8x128xi32>, i32 -> vector<8x128xi32>
    %c-1_i32_10 = arith.constant -1 : i32
    %34 = vector.broadcast %c-1_i32_10 : i32 to vector<8x128xi32>
    %35 = arith.select %32, %33, %34 : vector<8x128xi1>, vector<8x128xi32>
    %c0_i32_11 = arith.constant 0 : i32
    %36 = vector.broadcast %c0_i32_11 : i32 to vector<8x128xi32>
    %37 = arith.cmpi sge, %30, %36 : vector<8x128xi32>
    %38 = arith.select %37, %30, %35 : vector<8x128xi1>, vector<8x128xi32>
    %c8_i32 = arith.constant 8 : i32
    %39 = vector.broadcast %c8_i32 : i32 to vector<8x128xi32>
    %40 = arith.cmpi sge, %2, %39 : vector<8x128xi32>
    %c8_i32_12 = arith.constant 8 : i32
    %41 = tpu.dynamic_rotate %38 by %c8_i32_12 dim 1 : vector<8x128xi32>, i32 -> vector<8x128xi32>
    %c-1_i32_13 = arith.constant -1 : i32
    %42 = vector.broadcast %c-1_i32_13 : i32 to vector<8x128xi32>
    %43 = arith.select %40, %41, %42 : vector<8x128xi1>, vector<8x128xi32>
    %c0_i32_14 = arith.constant 0 : i32
    %44 = vector.broadcast %c0_i32_14 : i32 to vector<8x128xi32>
    %45 = arith.cmpi sge, %38, %44 : vector<8x128xi32>
    %46 = arith.select %45, %38, %43 : vector<8x128xi1>, vector<8x128xi32>
    %c16_i32 = arith.constant 16 : i32
    %47 = vector.broadcast %c16_i32 : i32 to vector<8x128xi32>
    %48 = arith.cmpi sge, %2, %47 : vector<8x128xi32>
    %c16_i32_15 = arith.constant 16 : i32
    %49 = tpu.dynamic_rotate %46 by %c16_i32_15 dim 1 : vector<8x128xi32>, i32 -> vector<8x128xi32>
    %c-1_i32_16 = arith.constant -1 : i32
    %50 = vector.broadcast %c-1_i32_16 : i32 to vector<8x128xi32>
    %51 = arith.select %48, %49, %50 : vector<8x128xi1>, vector<8x128xi32>
    %c0_i32_17 = arith.constant 0 : i32
    %52 = vector.broadcast %c0_i32_17 : i32 to vector<8x128xi32>
    %53 = arith.cmpi sge, %46, %52 : vector<8x128xi32>
    %54 = arith.select %53, %46, %51 : vector<8x128xi1>, vector<8x128xi32>
    %c32_i32 = arith.constant 32 : i32
    %55 = vector.broadcast %c32_i32 : i32 to vector<8x128xi32>
    %56 = arith.cmpi sge, %2, %55 : vector<8x128xi32>
    %c32_i32_18 = arith.constant 32 : i32
    %57 = tpu.dynamic_rotate %54 by %c32_i32_18 dim 1 : vector<8x128xi32>, i32 -> vector<8x128xi32>
    %c-1_i32_19 = arith.constant -1 : i32
    %58 = vector.broadcast %c-1_i32_19 : i32 to vector<8x128xi32>
    %59 = arith.select %56, %57, %58 : vector<8x128xi1>, vector<8x128xi32>
    %c0_i32_20 = arith.constant 0 : i32
    %60 = vector.broadcast %c0_i32_20 : i32 to vector<8x128xi32>
    %61 = arith.cmpi sge, %54, %60 : vector<8x128xi32>
    %62 = arith.select %61, %54, %59 : vector<8x128xi1>, vector<8x128xi32>
    %c64_i32 = arith.constant 64 : i32
    %63 = vector.broadcast %c64_i32 : i32 to vector<8x128xi32>
    %64 = arith.cmpi sge, %2, %63 : vector<8x128xi32>
    %c64_i32_21 = arith.constant 64 : i32
    %65 = tpu.dynamic_rotate %62 by %c64_i32_21 dim 1 : vector<8x128xi32>, i32 -> vector<8x128xi32>
    %c-1_i32_22 = arith.constant -1 : i32
    %66 = vector.broadcast %c-1_i32_22 : i32 to vector<8x128xi32>
    %67 = arith.select %64, %65, %66 : vector<8x128xi1>, vector<8x128xi32>
    %c0_i32_23 = arith.constant 0 : i32
    %68 = vector.broadcast %c0_i32_23 : i32 to vector<8x128xi32>
    %69 = arith.cmpi sge, %62, %68 : vector<8x128xi32>
    %70 = arith.select %69, %62, %67 : vector<8x128xi1>, vector<8x128xi32>
    %71 = vector.extract_strided_slice %70 {offsets = [0, 127], sizes = [8, 1], strides = [1, 1]} : vector<8x128xi32> to vector<8x1xi32>
    %72 = vector.shape_cast %71 : vector<8x1xi32> to vector<8x1xi32>
    %73 = vector.broadcast %72 : vector<8x1xi32> to vector<8x128xi32>
    %c1_i32_24 = arith.constant 1 : i32
    %74 = vector.broadcast %c1_i32_24 : i32 to vector<8x128xi32>
    %75 = arith.cmpi sge, %3, %74 : vector<8x128xi32>
    %c1_i32_25 = arith.constant 1 : i32
    %76 = tpu.dynamic_rotate %73 by %c1_i32_25 dim 0 : vector<8x128xi32>, i32 -> vector<8x128xi32>
    %c-1_i32_26 = arith.constant -1 : i32
    %77 = vector.broadcast %c-1_i32_26 : i32 to vector<8x128xi32>
    %78 = arith.select %75, %76, %77 : vector<8x128xi1>, vector<8x128xi32>
    %c1_i32_27 = arith.constant 1 : i32
    %79 = vector.broadcast %c1_i32_27 : i32 to vector<8x128xi32>
    %80 = arith.cmpi sge, %3, %79 : vector<8x128xi32>
    %c1_i32_28 = arith.constant 1 : i32
    %81 = tpu.dynamic_rotate %78 by %c1_i32_28 dim 0 : vector<8x128xi32>, i32 -> vector<8x128xi32>
    %c-1_i32_29 = arith.constant -1 : i32
    %82 = vector.broadcast %c-1_i32_29 : i32 to vector<8x128xi32>
    %83 = arith.select %80, %81, %82 : vector<8x128xi1>, vector<8x128xi32>
    %c0_i32_30 = arith.constant 0 : i32
    %84 = vector.broadcast %c0_i32_30 : i32 to vector<8x128xi32>
    %85 = arith.cmpi sge, %78, %84 : vector<8x128xi32>
    %86 = arith.select %85, %78, %83 : vector<8x128xi1>, vector<8x128xi32>
    %c2_i32_31 = arith.constant 2 : i32
    %87 = vector.broadcast %c2_i32_31 : i32 to vector<8x128xi32>
    %88 = arith.cmpi sge, %3, %87 : vector<8x128xi32>
    %c2_i32_32 = arith.constant 2 : i32
    %89 = tpu.dynamic_rotate %86 by %c2_i32_32 dim 0 : vector<8x128xi32>, i32 -> vector<8x128xi32>
    %c-1_i32_33 = arith.constant -1 : i32
    %90 = vector.broadcast %c-1_i32_33 : i32 to vector<8x128xi32>
    %91 = arith.select %88, %89, %90 : vector<8x128xi1>, vector<8x128xi32>
    %c0_i32_34 = arith.constant 0 : i32
    %92 = vector.broadcast %c0_i32_34 : i32 to vector<8x128xi32>
    %93 = arith.cmpi sge, %86, %92 : vector<8x128xi32>
    %94 = arith.select %93, %86, %91 : vector<8x128xi1>, vector<8x128xi32>
    %c4_i32_35 = arith.constant 4 : i32
    %95 = vector.broadcast %c4_i32_35 : i32 to vector<8x128xi32>
    %96 = arith.cmpi sge, %3, %95 : vector<8x128xi32>
    %c4_i32_36 = arith.constant 4 : i32
    %97 = tpu.dynamic_rotate %94 by %c4_i32_36 dim 0 : vector<8x128xi32>, i32 -> vector<8x128xi32>
    %c-1_i32_37 = arith.constant -1 : i32
    %98 = vector.broadcast %c-1_i32_37 : i32 to vector<8x128xi32>
    %99 = arith.select %96, %97, %98 : vector<8x128xi1>, vector<8x128xi32>
    %c0_i32_38 = arith.constant 0 : i32
    %100 = vector.broadcast %c0_i32_38 : i32 to vector<8x128xi32>
    %101 = arith.cmpi sge, %94, %100 : vector<8x128xi32>
    %102 = arith.select %101, %94, %99 : vector<8x128xi1>, vector<8x128xi32>
    %c0_i32_39 = arith.constant 0 : i32
    %103 = vector.broadcast %c0_i32_39 : i32 to vector<8x128xi32>
    %104 = arith.cmpi sge, %70, %103 : vector<8x128xi32>
    %105 = arith.select %104, %70, %102 : vector<8x128xi1>, vector<8x128xi32>
    %c1_i32_40 = arith.constant 1 : i32
    %106 = vector.broadcast %c1_i32_40 : i32 to vector<8x128xi32>
    %107 = arith.cmpi sge, %2, %106 : vector<8x128xi32>
    %c1_i32_41 = arith.constant 1 : i32
    %108 = tpu.dynamic_rotate %105 by %c1_i32_41 dim 1 : vector<8x128xi32>, i32 -> vector<8x128xi32>
    %109 = arith.select %107, %108, %102 : vector<8x128xi1>, vector<8x128xi32>
    %c0_i32_42 = arith.constant 0 : i32
    %110 = vector.broadcast %c0_i32_42 : i32 to vector<8x128xi32>
    %111 = arith.cmpi ne, %0, %110 : vector<8x128xi32>
    %112 = arith.andi %12, %111 : vector<8x128xi1>
    %113 = arith.cmpi ne, %0, %109 : vector<8x128xi32>
    %114 = arith.andi %112, %113 : vector<8x128xi1>
    %115 = arith.extui %114 : vector<8x128xi1> to vector<8x128xi32>
    %c0_43 = arith.constant 0 : index
    %c0_44 = arith.constant 0 : index
    %116 = vector.load %arg3[%c0_43, %c0_44] : memref<8x128xi32, #tpu.memory_space<vmem>>, vector<8x128xi32>
    tpu.vector_store %arg3[%c0_43, %c0_44], %115 {strides = array<i32>} : memref<8x128xi32, #tpu.memory_space<vmem>>, vector<8x128xi32>,
    return
  }
}

</mosaic_0001>

<llo_original>
// kernel: tpu_custom_call.1
$region0: #{tpu_custom_call.1}
  #allocation0 [shape = 'u32[]', space=smem, size = 0x4, offset = 0x4, fixed_abs, tag = 'smem constant byte address 0x4 - core index']
  #allocation1 [shape = 'u32[144,128]{1,0:T(1,128)}', space=vmem, size = 0x12000, scoped, tag = 'internal scratch']
  #allocation2 [shape = 's32[1]{0:T(128)S(6)}', space=smem, size = 0x200, scoped, tag = 'scoped memory for tpu_custom_call.1']
  %s0 = inlined_call_operand.hbm [shape: s32[8,128], index: 0, kind: input, shape index: {}]
  %s1 = inlined_call_operand.hbm [shape: f32[8,128], index: 1, kind: input, shape index: {}]
  %s2 = inlined_call_operand.<no memory space> [shape: s32[1], index: 2, kind: input, shape index: {}]
  %s3 = inlined_call_operand.hbm [shape: s32[8,128], index: 3, kind: output, shape index: {}]
  %s4 = sld [smem:[#allocation0]]
  $region30: #{tpu_custom_call.1} parent=0
    _
  %s6 = ssub.s32 1, %s4
  %s7 = scalar_select 0, %s6, %s4
  %8 = sst [smem:[#allocation2]] %s2
  $region1: #{tpu_custom_call.1} parent=0
    #allocation3 [shape = 'u8[4096]{0}', space=vmem, size = 0x1000, scoped, tag = 'input window, operand 0, single buffered']
    #allocation4 [shape = 's32[1]{0}', space=sflag, size = 0x4, scoped, tag = 'scoped memory for tpu_custom_call.1']
    #allocation5 [shape = 's32[1]{0}', space=sflag, size = 0x4, scoped, tag = 'scoped memory for tpu_custom_call.1']
    #allocation6 [shape = 'u8[4096]{0}', space=vmem, size = 0x1000, scoped, tag = 'input window, operand 1, single buffered']
    #allocation7 [shape = 's32[1]{0}', space=sflag, size = 0x4, scoped, tag = 'scoped memory for tpu_custom_call.1']
    #allocation8 [shape = 'u8[4096]{0}', space=vmem, size = 0x1000, scoped, tag = 'output window, operand 0, single buffered']
    %9 = vsyncpa [#allocation4], 0
    %10 = vsyncpa [#allocation7], 0
    %11 = vsyncpa [#allocation5], 0
    // Predicated region
    $region2: #{tpu_custom_call.1} parent=1 // pred_check
      _
    $region3: #{tpu_custom_call.1} parent=1 // pred_check_branch
      %13 = sbr.rel (0) target = $region5
    $region4: #{tpu_custom_call.1} parent=1 // pred_region
      %s15 = ssub.s32 128, 128
      %16 = vsyncadd [#allocation4], %s15
      %s18 = sshll.u32 [#allocation3], 4
      %s19 = int_to_ptr.vmem [resolvable:$true] %s18
      %21 = dma.hbm_to_vmem [thread:$0]  %s0, 128, %s19, [#allocation4]
    $region5: #{tpu_custom_call.1} parent=1 // pred_fallthru
      _
    // Predicated region
    $region6: #{tpu_custom_call.1} parent=1 // pred_check
      _
    $region7: #{tpu_custom_call.1} parent=1 // pred_check_branch
      %23 = sbr.rel (0) target = $region9
    $region8: #{tpu_custom_call.1} parent=1 // pred_region
      %s25 = ssub.s32 128, 128
      %26 = vsyncadd [#allocation7], %s25
      %s28 = sshll.u32 [#allocation6], 4
      %s29 = int_to_ptr.vmem [resolvable:$true] %s28
      %31 = dma.hbm_to_vmem [thread:$0]  %s1, 128, %s29, [#allocation7]
    $region9: #{tpu_custom_call.1} parent=1 // pred_fallthru
      _
    // Predicated region
    $region10: #{tpu_custom_call.1} parent=1 // pred_check
      _
    $region11: #{tpu_custom_call.1} parent=1 // pred_check_branch
      %33 = sbr.rel (0) target = $region13
    $region12: #{tpu_custom_call.1} parent=1 // pred_region
      _
    $region13: #{tpu_custom_call.1} parent=1 // pred_fallthru
      _
    // Predicated region
    $region14: #{tpu_custom_call.1} parent=1 // pred_check
      _
    $region15: #{tpu_custom_call.1} parent=1 // pred_check_branch
      %35 = sbr.rel (0) target = $region17
    $region16: #{tpu_custom_call.1} parent=1 // pred_region
      %36 = dma.done [#allocation4], 128
    $region17: #{tpu_custom_call.1} parent=1 // pred_fallthru
      _
    // Predicated region
    $region18: #{tpu_custom_call.1} parent=1 // pred_check
      _
    $region19: #{tpu_custom_call.1} parent=1 // pred_check_branch
      %38 = sbr.rel (0) target = $region21
    $region20: #{tpu_custom_call.1} parent=1 // pred_region
      %39 = dma.done [#allocation7], 128
    $region21: #{tpu_custom_call.1} parent=1 // pred_fallthru
      _
    %v40 = vld [vmem:[#allocation3] sm:$0xff]
    %s41 = sld [smem:[#allocation2]]
    %v42 = vlaneseq
    %v43 = vand.u32 %v42, 127
    %v44 = vlaneseq
    %v45 = vshrl.u32 %v44, 7
    %v46 = vmul.u32 %v45, 128
    %v47 = vadd.s32 %v46, %v43
    %v48 = vld [vmem:[#allocation6] sm:$0xff]
    %vm49 = vcmp.gt.f32.partialorder %v48, 0.0
    %v50 = vstv %s41
    %vm51 = vcmp.lt.s32.totalorder %v47, %v50
    %vm52 = vmand %vm49, %vm51
    %v53 = vsel %vm52, %v40, 4294967295
    %vm54 = vcmp.ge.s32.totalorder %v43, 1
    %55 = vrot.lane.b32.xlu0 %v53, 1
    %v56 = vpop.permute.xlu0 %55
    %v57 = vsel %vm54, %v56, 4294967295
    %vm58 = vcmp.ge.s32.totalorder %v53, 0
    %v59 = vsel %vm58, %v53, %v57
    %vm60 = vcmp.ge.s32.totalorder %v43, 2
    %61 = vrot.lane.b32.xlu0 %v59, 2
    %v62 = vpop.permute.xlu0 %61
    %v63 = vsel %vm60, %v62, 4294967295
    %vm64 = vcmp.ge.s32.totalorder %v59, 0
    %v65 = vsel %vm64, %v59, %v63
    %vm66 = vcmp.ge.s32.totalorder %v43, 4
    %67 = vrot.lane.b32.xlu0 %v65, 4
    %v68 = vpop.permute.xlu0 %67
    %v69 = vsel %vm66, %v68, 4294967295
    %vm70 = vcmp.ge.s32.totalorder %v65, 0
    %v71 = vsel %vm70, %v65, %v69
    %vm72 = vcmp.ge.s32.totalorder %v43, 8
    %73 = vrot.lane.b32.xlu0 %v71, 8
    %v74 = vpop.permute.xlu0 %73
    %v75 = vsel %vm72, %v74, 4294967295
    %vm76 = vcmp.ge.s32.totalorder %v71, 0
    %v77 = vsel %vm76, %v71, %v75
    %vm78 = vcmp.ge.s32.totalorder %v43, 16
    %79 = vrot.lane.b32.xlu0 %v77, 16
    %v80 = vpop.permute.xlu0 %79
    %v81 = vsel %vm78, %v80, 4294967295
    %vm82 = vcmp.ge.s32.totalorder %v77, 0
    %v83 = vsel %vm82, %v77, %v81
    %vm84 = vcmp.ge.s32.totalorder %v43, 32
    %85 = vrot.lane.b32.xlu0 %v83, 32
    %v86 = vpop.permute.xlu0 %85
    %v87 = vsel %vm84, %v86, 4294967295
    %vm88 = vcmp.ge.s32.totalorder %v83, 0
    %v89 = vsel %vm88, %v83, %v87
    %vm90 = vcmp.ge.s32.totalorder %v43, 64
    %91 = vrot.lane.b32.xlu0 %v89, 64
    %v92 = vpop.permute.xlu0 %91
    %v93 = vsel %vm90, %v92, 4294967295
    %vm94 = vcmp.ge.s32.totalorder %v89, 0
    %v95 = vsel %vm94, %v89, %v93
    %96 = vset.pattern.permute.xlu0 127
    %97 = vperm.xlu0 %96, %v95
    %v98 = vpop.permute.xlu0 %97
    %vm99 = vcmp.ge.s32.totalorder %v45, 1
    %v100 = vrot.slane %v98, 7
    %v101 = vsel %vm99, %v100, 4294967295
    %v102 = vrot.slane %v101, 7
    %v103 = vsel %vm99, %v102, 4294967295
    %vm104 = vcmp.ge.s32.totalorder %v101, 0
    %v105 = vsel %vm104, %v101, %v103
    %vm106 = vcmp.ge.s32.totalorder %v45, 2
    %v107 = vrot.slane %v105, 6
    %v108 = vsel %vm106, %v107, 4294967295
    %vm109 = vcmp.ge.s32.totalorder %v105, 0
    %v110 = vsel %vm109, %v105, %v108
    %vm111 = vcmp.ge.s32.totalorder %v45, 4
    %v112 = vrot.slane %v110, 4
    %v113 = vsel %vm111, %v112, 4294967295
    %vm114 = vcmp.ge.s32.totalorder %v110, 0
    %v115 = vsel %vm114, %v110, %v113
    %vm116 = vcmp.ge.s32.totalorder %v95, 0
    %v117 = vsel %vm116, %v95, %v115
    %118 = vrot.lane.b32.xlu0 %v117, 1
    %v119 = vpop.permute.xlu0 %118
    %v120 = vsel %vm54, %v119, %v115
    %vm121 = vcmp.ne.s32.totalorder %v40, 0
    %vm122 = vmand %vm52, %vm121
    %vm123 = vcmp.ne.s32.totalorder %v40, %v120
    %vm124 = vmand %vm122, %vm123
    %v125 = vsel %vm124, 1, 0
    %126 = vst [vmem:[#allocation8] sm:$0xff] %v125
    // Predicated region
    $region22: #{tpu_custom_call.1} parent=1 // pred_check
      _
    $region23: #{tpu_custom_call.1} parent=1 // pred_check_branch
      %128 = sbr.rel (0) target = $region25
    $region24: #{tpu_custom_call.1} parent=1 // pred_region
      %s130 = ssub.s32 128, 128
      %131 = vsyncadd [#allocation5], %s130
      %s133 = sshll.u32 [#allocation8], 4
      %s134 = int_to_ptr.vmem [resolvable:$true] %s133
      %136 = dma.vmem_to_hbm [thread:$0]  %s134, 128, %s3, [#allocation5]
    $region25: #{tpu_custom_call.1} parent=1 // pred_fallthru
      _
    // Predicated region
    $region26: #{tpu_custom_call.1} parent=1 // pred_check
      _
    $region27: #{tpu_custom_call.1} parent=1 // pred_check_branch
      %138 = sbr.rel (0) target = $region29
    $region28: #{tpu_custom_call.1} parent=1 // pred_region
      %139 = dma.done [#allocation5], 128
    $region29: #{tpu_custom_call.1} parent=1 // pred_fallthru
      _
    %140 = vsyncpa [#allocation4], 1
    %141 = vsyncpa [#allocation7], 1
    %142 = vsyncpa [#allocation5], 1

</llo_original>
